<compile_context>
chip_gen: v7x
topology: tpu7x:2x2x1
jax: 0.10.0
libtpu: 0.0.40
codegen_flags: <defaults>
</compile_context>

<pallas_src>
import jax
import jax.numpy as jnp
from jax import lax
from jax.experimental import pallas as pl
from jax.experimental.pallas import tpu as pltpu


def _round_up(x: int, m: int) -> int:
    return ((x + m - 1) // m) * m


def _cdiv(a: int, b: int) -> int:
    return -(-a // b)


def _tpu_kind() -> str:
    try:
        return jax.devices()[0].device_kind.lower()
    except Exception:
        return ""


_KIND = _tpu_kind()
_IS_V7X = ("v7" in _KIND) or ("7x" in _KIND)
# v7x has only 64 MiB VMEM per TensorCore -> smaller tile budget + scoped limit.
if _KIND and not _IS_V7X:
    _TILE_BYTES = 8 * 1024 * 1024      # per-input f32-equivalent tile budget
    _VMEM_LIMIT = 96 * 1024 * 1024     # physical VMEM is 128 MiB on v5e/v6e
else:
    _TILE_BYTES = 4 * 1024 * 1024
    _VMEM_LIMIT = 48 * 1024 * 1024


def _sublane_multiple(*dtypes) -> int:
    """Packed-sublane multiple: 8 for 4-byte, 16 for 2-byte, 32 for 1-byte."""
    sub = 8
    for dt in dtypes:
        sub = max(sub, 32 // max(jnp.dtype(dt).itemsize, 1))
    return sub


def _choose_tiles(B: int, C: int, sub: int):
    """Pick (bm, bc, nbi, ncj).  Prefer full-row tiles (contiguous HBM bursts);
    tiles respect the (8,128)-or-full-dim layout rule for every dtype."""
    max_elems = _TILE_BYTES // 4
    if C * sub <= max_elems:
        # Full rows fit the budget: bc = C, tile only the batch axis.
        bc, ncj = C, 1
        bm = max(sub, (max_elems // C) // sub * sub)
        if bm >= B:
            bm, nbi = B, 1                       # single block, full dims
        else:
            nbi = _cdiv(B, bm)
            bm = min(bm, _round_up(_cdiv(B, nbi), sub))   # rebalance -> less overhang
            nbi = _cdiv(B, bm)
    else:
        # Very wide rows: tile the channel axis too (bc multiple of 128 < C).
        bc = max(128, (max_elems // sub) // 128 * 128)
        ncj = _cdiv(C, bc)
        bm = max(sub, (max_elems // bc) // sub * sub)
        if bm >= B:
            bm, nbi = B, 1
        else:
            nbi = _cdiv(B, bm)
    return bm, bc, nbi, ncj


def _make_kernel(B: int, C: int, bm: int, bc: int, nbi: int, ncj: int):
    mask_rows = nbi * bm != B
    mask_cols = ncj * bc != C

    def kernel(x_ref, y_ref, o_ref):
        # Cast after the VMEM load (VPU has huge slack), log on EUP, mul on VPU.
        xf = x_ref[...].astype(jnp.float32)
        yf = y_ref[...].astype(jnp.float32)
        if mask_rows or mask_cols:
            valid = None
            if mask_rows:
                rows = pl.program_id(0) * bm + lax.broadcasted_iota(
                    jnp.int32, (bm, bc), 0)
                valid = rows < B
            if mask_cols:
                cols = pl.program_id(1) * bc + lax.broadcasted_iota(
                    jnp.int32, (bm, bc), 1)
                cvalid = cols < C
                valid = cvalid if valid is None else (valid & cvalid)
            # Out-of-range cells: x -> 1 (log(1)=0), y -> 0 so they contribute
            # exactly zero and never produce NaN/Inf from uninitialized padding.
            xf = jnp.where(valid, xf, 1.0)
            yf = jnp.where(valid, yf, 0.0)
        prod = yf * jnp.log(xf)                              # (bm, bc)
        # Sublane-only reduction -> lane-dense (1, bc) partial for this tile.
        o_ref[0] = jnp.sum(prod, axis=0, keepdims=True)      # o_ref is (1,1,bc)

    return kernel


def my_loss(x: jax.Array, y: jax.Array) -> jax.Array:
    """Pallas equivalent of MyLoss.forward for 2-D inputs (B, C).
    Note: x <= 0 yields -inf/NaN from log, exactly like the PyTorch reference."""
    assert x.shape == y.shape and x.ndim == 2
    B, C = x.shape

    sub = _sublane_multiple(x.dtype, y.dtype)
    bm, bc, nbi, ncj = _choose_tiles(B, C, sub)

    # Megacore sharding: on v7x, split the longer grid axis across both TCs.
    if _IS_V7X and max(nbi, ncj) >= 2:
        if nbi >= ncj:
            dims = (pltpu.CORE_PARALLEL, pltpu.PARALLEL)
        else:
            dims = (pltpu.PARALLEL, pltpu.CORE_PARALLEL)
    else:
        dims = (pltpu.PARALLEL, pltpu.PARALLEL)

    partials = pl.pallas_call(
        _make_kernel(B, C, bm, bc, nbi, ncj),
        out_shape=jax.ShapeDtypeStruct((nbi, 1, ncj * bc), jnp.float32),
        grid_spec=pl.GridSpec(
            grid=(nbi, ncj),
            in_specs=[
                pl.BlockSpec((bm, bc), lambda i, j: (i, j)),
                pl.BlockSpec((bm, bc), lambda i, j: (i, j)),
            ],
            out_specs=pl.BlockSpec((1, 1, bc), lambda i, j: (i, 0, j)),
        ),
        compiler_params=pltpu.CompilerParams(
            dimension_semantics=dims,
            vmem_limit_bytes=_VMEM_LIMIT,
        ),
    )(x, y)

    # Tiny host-side reduction; fold negation and the 1/B mean into one scale.
    return jnp.sum(partials) * (-1.0 / B)


def my_loss_ref(x, y):
    """Pure-JAX reference matching the PyTorch module."""
    return jnp.mean(jnp.sum(-(y * jnp.log(x)), axis=1))


if __name__ == "__main__":
    key = jax.random.PRNGKey(0)
    ks = jax.random.split(key, 8)

    # Case 1: small aligned f32.
    x1 = jax.nn.softmax(jax.random.normal(ks[0], (8, 128), jnp.float32), axis=-1)
    y1 = jax.nn.softmax(jax.random.normal(ks[1], (8, 128), jnp.float32) * 3.0, axis=-1)
    o1 = jax.block_until_ready(my_loss(x1, y1))
    assert jnp.allclose(o1, my_loss_ref(x1, y1), rtol=1e-5, atol=1e-5), (o1, my_loss_ref(x1, y1))

    # Case 2: small ragged f32 (no axis aligned; no wrapper-side padding).
    x2 = jax.nn.softmax(jax.random.normal(ks[2], (6, 100), jnp.float32), axis=-1)
    y2 = jax.nn.softmax(jax.random.normal(ks[3], (6, 100), jnp.float32) * 3.0, axis=-1)
    o2 = jax.block_until_ready(my_loss(x2, y2))
    assert jnp.allclose(o2, my_loss_ref(x2, y2), rtol=1e-5, atol=1e-5), (o2, my_loss_ref(x2, y2))

    # Case 3: small bf16 (packed-sublane bm rounding + in-kernel upcast).
    x3 = jax.nn.softmax(jax.random.normal(ks[4], (16, 256), jnp.float32), axis=-1).astype(jnp.bfloat16)
    y3 = jax.nn.softmax(jax.random.normal(ks[5], (16, 256), jnp.float32) * 3.0, axis=-1).astype(jnp.bfloat16)
    o3 = jax.block_until_ready(my_loss(x3, y3))
    r3 = my_loss_ref(x3.astype(jnp.float32), y3.astype(jnp.float32))
    assert jnp.allclose(o3, r3, rtol=1e-4, atol=1e-4), (o3, r3)

    # Case 4: medium ragged f32 — multiple row blocks + masked partial last block.
    x4 = jax.nn.softmax(jax.random.normal(ks[6], (4100, 1024), jnp.float32), axis=-1)
    y4 = jax.nn.softmax(jax.random.normal(ks[7], (4100, 1024), jnp.float32) * 3.0, axis=-1)
    o4 = jax.block_until_ready(my_loss(x4, y4))
    r4 = my_loss_ref(x4, y4)
    assert jnp.allclose(o4, r4, rtol=1e-4, atol=1e-3), (o4, r4)

    print("KERNEL_OK")
</pallas_src>

<mosaic_0001>
module attributes {stable_mosaic.version = 11 : i64} {
  func.func @kernel(%arg0: i32, %arg1: i32, %arg2: memref<8x128xf32, #tpu.memory_space<vmem>>, %arg3: memref<8x128xf32, #tpu.memory_space<vmem>>, %arg4: memref<1x1x128xf32, #tpu.memory_space<vmem>>) attributes {dimension_semantics = [#tpu.dimension_semantics<parallel>, #tpu.dimension_semantics<parallel>], iteration_bounds = array<i64: 1, 1>, scalar_prefetch = 0 : i64, scratch_operands = 0 : i64, tpu.core_type = #tpu.core_type<tc>, window_params = [{transform_indices = @transform_0, window_bounds = array<i64: 8, 128>}, {transform_indices = @transform_1, window_bounds = array<i64: 8, 128>}, {transform_indices = @transform_2, window_bounds = array<i64: 1, 1, 128>}]} {
    %c0 = arith.constant 0 : index
    %c0_0 = arith.constant 0 : index
    %0 = vector.load %arg2[%c0, %c0_0] : memref<8x128xf32, #tpu.memory_space<vmem>>, vector<8x128xf32>
    %c0_1 = arith.constant 0 : index
    %c0_2 = arith.constant 0 : index
    %1 = vector.load %arg3[%c0_1, %c0_2] : memref<8x128xf32, #tpu.memory_space<vmem>>, vector<8x128xf32>
    %2 = math.log %0 : vector<8x128xf32>
    %3 = arith.mulf %1, %2 : vector<8x128xf32>
    %cst = arith.constant dense<0.000000e+00> : vector<128xf32>
    %4 = vector.multi_reduction <add>, %3, %cst [0] : vector<8x128xf32> to vector<128xf32>
    %5 = vector.shape_cast %4 : vector<128xf32> to vector<1x128xf32>
    %c0_3 = arith.constant 0 : index
    %c0_4 = arith.constant 0 : index
    %c0_5 = arith.constant 0 : index
    %6 = vector.load %arg4[%c0_3, %c0_4, %c0_5] : memref<1x1x128xf32, #tpu.memory_space<vmem>>, vector<1x1x128xf32>
    %7 = vector.shape_cast %6 : vector<1x1x128xf32> to vector<1x128xf32>
    %8 = vector.shape_cast %5 : vector<1x128xf32> to vector<1x1x128xf32>
    tpu.vector_store %arg4[%c0_3, %c0_4, %c0_5], %8 {strides = array<i32>} : memref<1x1x128xf32, #tpu.memory_space<vmem>>, vector<1x1x128xf32>,
    return
  }
  func.func @transform_0(%arg0: i32, %arg1: i32) -> (i32, i32) {
    %c0_i32 = arith.constant 0 : i32
    return %arg0, %arg1 : i32, i32
  }
  func.func @transform_1(%arg0: i32, %arg1: i32) -> (i32, i32) {
    %c0_i32 = arith.constant 0 : i32
    return %arg0, %arg1 : i32, i32
  }
  func.func @transform_2(%arg0: i32, %arg1: i32) -> (i32, i32, i32) {
    %c0_i32 = arith.constant 0 : i32
    %c0_i32_0 = arith.constant 0 : i32
    return %arg0, %c0_i32, %arg1 : i32, i32, i32
  }
}

</mosaic_0001>

<llo_original>
// kernel: tpu_custom_call.1
$region0: #{tpu_custom_call.1}
  #allocation0 [shape = 'u32[]', space=smem, size = 0x4, offset = 0x4, fixed_abs, tag = 'smem constant byte address 0x4 - core index']
  #allocation1 [shape = 'u32[144,128]{1,0:T(1,128)}', space=vmem, size = 0x12000, scoped, tag = 'internal scratch']
  %s0 = inlined_call_operand.hbm [shape: f32[8,128], index: 0, kind: input, shape index: {}]
  %s1 = inlined_call_operand.hbm [shape: f32[8,128], index: 1, kind: input, shape index: {}]
  %s2 = inlined_call_operand.hbm [shape: f32[1,1,128], index: 2, kind: output, shape index: {}]
  %s3 = sld [smem:[#allocation0]]
  $region26: #{tpu_custom_call.1} parent=0
    _
  %s5 = ssub.s32 1, %s3
  %s6 = scalar_select 0, %s5, %s3
  $region1: #{tpu_custom_call.1} parent=0
    #allocation2 [shape = 'u8[4096]{0}', space=vmem, size = 0x1000, scoped, tag = 'input window, operand 0, single buffered']
    #allocation3 [shape = 's32[1]{0}', space=sflag, size = 0x4, scoped, tag = 'scoped memory for tpu_custom_call.1']
    #allocation4 [shape = 's32[1]{0}', space=sflag, size = 0x4, scoped, tag = 'scoped memory for tpu_custom_call.1']
    #allocation5 [shape = 'u8[4096]{0}', space=vmem, size = 0x1000, scoped, tag = 'input window, operand 1, single buffered']
    #allocation6 [shape = 's32[1]{0}', space=sflag, size = 0x4, scoped, tag = 'scoped memory for tpu_custom_call.1']
    #allocation7 [shape = 'u8[512]{0}', space=vmem, size = 0x400, scoped, tag = 'output window, operand 0, single buffered']
    %7 = vsyncpa [#allocation3], 0
    %8 = vsyncpa [#allocation6], 0
    %9 = vsyncpa [#allocation4], 0
    // Predicated region
    $region2: #{tpu_custom_call.1} parent=1 // pred_check
      _
    $region3: #{tpu_custom_call.1} parent=1 // pred_check_branch
      %11 = sbr.rel (0) target = $region5
    $region4: #{tpu_custom_call.1} parent=1 // pred_region
      %s13 = ssub.s32 128, 128
      %14 = vsyncadd [#allocation3], %s13
      %s16 = sshll.u32 [#allocation2], 4
      %s17 = int_to_ptr.vmem [resolvable:$true] %s16
      %19 = dma.hbm_to_vmem [thread:$0]  %s0, 128, %s17, [#allocation3]
    $region5: #{tpu_custom_call.1} parent=1 // pred_fallthru
      _
    // Predicated region
    $region6: #{tpu_custom_call.1} parent=1 // pred_check
      _
    $region7: #{tpu_custom_call.1} parent=1 // pred_check_branch
      %21 = sbr.rel (0) target = $region9
    $region8: #{tpu_custom_call.1} parent=1 // pred_region
      %s23 = ssub.s32 128, 128
      %24 = vsyncadd [#allocation6], %s23
      %s26 = sshll.u32 [#allocation5], 4
      %s27 = int_to_ptr.vmem [resolvable:$true] %s26
      %29 = dma.hbm_to_vmem [thread:$0]  %s1, 128, %s27, [#allocation6]
    $region9: #{tpu_custom_call.1} parent=1 // pred_fallthru
      _
    // Predicated region
    $region10: #{tpu_custom_call.1} parent=1 // pred_check
      _
    $region11: #{tpu_custom_call.1} parent=1 // pred_check_branch
      %31 = sbr.rel (0) target = $region13
    $region12: #{tpu_custom_call.1} parent=1 // pred_region
      %32 = dma.done [#allocation3], 128
    $region13: #{tpu_custom_call.1} parent=1 // pred_fallthru
      _
    // Predicated region
    $region14: #{tpu_custom_call.1} parent=1 // pred_check
      _
    $region15: #{tpu_custom_call.1} parent=1 // pred_check_branch
      %34 = sbr.rel (0) target = $region17
    $region16: #{tpu_custom_call.1} parent=1 // pred_region
      %35 = dma.done [#allocation6], 128
    $region17: #{tpu_custom_call.1} parent=1 // pred_fallthru
      _
    %v36 = vld [vmem:[#allocation2] sm:$0xff]
    %v37 = vld [vmem:[#allocation5] sm:$0xff]
    %v38 = vlog2.pop %v36
    %v39 = vmul.f32 %v38, 0.6931472
    %v40 = vmul.f32 %v37, %v39
    %v41 = vrot.slane %v40, 4
    %v42 = vadd.f32 %v40, %v41
    %v43 = vrot.slane %v42, 2
    %v44 = vadd.f32 %v42, %v43
    %v45 = vrot.slane %v44, 1
    %v46 = vadd.f32 %v44, %v45
    %47 = vst [vmem:[#allocation7] sm:$0x1] %v46
    // Predicated region
    $region18: #{tpu_custom_call.1} parent=1 // pred_check
      _
    $region19: #{tpu_custom_call.1} parent=1 // pred_check_branch
      %49 = sbr.rel (0) target = $region21
    $region20: #{tpu_custom_call.1} parent=1 // pred_region
      %s51 = ssub.s32 16, 16
      %52 = vsyncadd [#allocation4], %s51
      %s54 = sshll.u32 [#allocation7], 4
      %s55 = int_to_ptr.vmem [resolvable:$true] %s54
      %57 = dma.vmem_to_hbm [thread:$0]  %s55, 16, %s2, [#allocation4]
    $region21: #{tpu_custom_call.1} parent=1 // pred_fallthru
      _
    // Predicated region
    $region22: #{tpu_custom_call.1} parent=1 // pred_check
      _
    $region23: #{tpu_custom_call.1} parent=1 // pred_check_branch
      %59 = sbr.rel (0) target = $region25
    $region24: #{tpu_custom_call.1} parent=1 // pred_region
      %60 = dma.done [#allocation4], 16
    $region25: #{tpu_custom_call.1} parent=1 // pred_fallthru
      _
    %61 = vsyncpa [#allocation3], 1
    %62 = vsyncpa [#allocation6], 1
    %63 = vsyncpa [#allocation4], 1

</llo_original>
